<compile_context>
chip_gen: v5e
topology: v5e:2x2
jax: 0.10.0
libtpu: 0.0.40
codegen_flags: <defaults>
</compile_context>

<pallas_src>
import functools

import jax
import jax.numpy as jnp
from jax.experimental import pallas as pl
from jax.experimental.pallas import tpu as pltpu

FEA_DIM = 8      # raw per-point feature width
HID = 64         # hidden width (first hidden layer zero-padded 32 -> 64)
OUT_PT = 64      # point feature width after PPmodel
COMPRE = 16      # compressed voxel feature width
NCLASSES = 4     # segmentation classes
NWEATHER = 4     # weather classification classes (clf branch stand-in)

VMEM_LIMIT = 32 * 1024 * 1024   # explicit scoped-VMEM limit (fits all gens)


# --------------------------------------------------------------------------
# helpers
# --------------------------------------------------------------------------
def _round_up(x, m):
    return (x + m - 1) // m * m


def _num_tensorcores():
    """2 on v7x (megacore sharding pays off), 1 on v5e / v6e."""
    try:
        kind = jax.devices()[0].device_kind.lower()
    except Exception:
        return 1
    return 2 if "v7" in kind else 1


def _pick_block_rows(m, target=4096, multiple=128, min_blocks=1):
    """Largest row tile (HBM-roofline friendly), multiple of `multiple`.
    Only split for >= min_blocks grid steps when there are 2 TensorCores."""
    block = min(_round_up(target, multiple), _round_up(max(m, 1), multiple))
    if min_blocks > 1 and pl.cdiv(m, block) < min_blocks:
        block = max(multiple, _round_up(pl.cdiv(m, min_blocks), multiple))
    return block


# --------------------------------------------------------------------------
# Pallas kernel 1: fused per-point MLP (Linear+ReLU -> Linear+ReLU -> Linear)
# --------------------------------------------------------------------------
def _pt_mlp_kernel(x_ref, w1_ref, w2_ref, w3_ref, b_ref, o_ref):
    # f32 input cast to bf16 in-kernel; bf16 on the MXU, f32 accumulation;
    # bias add / ReLU in f32; intermediates never touch HBM.
    x = x_ref[...].astype(jnp.bfloat16)
    h = jnp.dot(x, w1_ref[...], preferred_element_type=jnp.float32)
    h = jnp.maximum(h + b_ref[0:1, :], 0.0)
    h = jnp.dot(h.astype(jnp.bfloat16), w2_ref[...],
                preferred_element_type=jnp.float32)
    h = jnp.maximum(h + b_ref[1:2, :], 0.0)
    h = jnp.dot(h.astype(jnp.bfloat16), w3_ref[...],
                preferred_element_type=jnp.float32)
    h = h + b_ref[2:3, :]
    # TODO(synk): once scatter-max moves into Pallas, emit this transposed as
    # (64, N) so the store is lane-dense (points on the 128-lane axis).
    o_ref[...] = h.astype(o_ref.dtype)


def point_mlp(pts, params, block_target=4096):
    m = pts.shape[0]
    bm = _pick_block_rows(m, target=block_target,
                          min_blocks=_num_tensorcores())
    nblk = pl.cdiv(m, bm)
    return pl.pallas_call(
        _pt_mlp_kernel,
        out_shape=jax.ShapeDtypeStruct((m, OUT_PT), jnp.bfloat16),
        grid=(nblk,),
        in_specs=[
            pl.BlockSpec((bm, FEA_DIM), lambda i: (i, 0)),      # points (f32, tiled)
            pl.BlockSpec((FEA_DIM, HID), lambda i: (0, 0)),     # w1 (resident)
            pl.BlockSpec((HID, OUT_PT), lambda i: (0, 0)),      # w2 (resident)
            pl.BlockSpec((OUT_PT, OUT_PT), lambda i: (0, 0)),   # w3 (resident)
            pl.BlockSpec((3, HID), lambda i: (0, 0)),           # packed biases
        ],
        out_specs=pl.BlockSpec((bm, OUT_PT), lambda i: (i, 0)),
        compiler_params=pltpu.CompilerParams(
            dimension_semantics=("parallel",),
            vmem_limit_bytes=VMEM_LIMIT),
    )(pts, params["w1"], params["w2"], params["w3"], params["b_pt"])


# --------------------------------------------------------------------------
# Pallas kernel 2: fused empty-voxel fixup + feature compression + 1x1x1
# classification head (+ weather-branch per-batch partial sums).
# Logits are emitted lane-dense as (nclasses, voxels).
# --------------------------------------------------------------------------
def _vox_head_kernel(x_ref, wc_ref, bc_ref, wot_ref, bo_ref,
                     o_ref, psum_ref, *, bm, hwl, nbatch):
    # fused empty-voxel fixup: segment_max fills empty voxels with -inf.
    x = x_ref[...].astype(jnp.float32)
    x = jnp.where(jnp.isfinite(x), x, 0.0)
    xb = x.astype(jnp.bfloat16)

    # compression + ReLU
    h = jnp.dot(xb, wc_ref[...], preferred_element_type=jnp.float32)
    h = jnp.maximum(h + bc_ref[...], 0.0)
    # logits^T = wo^T @ h^T  -> (nclasses, bm), lane-dense on the voxel axis
    logits_t = jax.lax.dot_general(
        wot_ref[...], h.astype(jnp.bfloat16),
        dimension_numbers=(((1,), (1,)), ((), ())),
        preferred_element_type=jnp.float32)
    o_ref[...] = logits_t + bo_ref[...]

    # fused weather-branch pooling: per-batch partial feature sums for this
    # tile (batch of global row r is r // hwl; tail/garbage rows masked out).
    base = pl.program_id(0) * bm
    r_idx = jax.lax.broadcasted_iota(jnp.int32, (nbatch, bm), 1) + base
    b_idx = jax.lax.broadcasted_iota(jnp.int32, (nbatch, bm), 0)
    lo = b_idx * hwl
    onehot = jnp.where((r_idx >= lo) & (r_idx < lo + hwl), 1.0, 0.0)
    psum_ref[0] = jax.lax.dot_general(
        onehot.astype(jnp.bfloat16), xb,
        dimension_numbers=(((1,), (0,)), ((), ())),
        preferred_element_type=jnp.float32)


def vox_head(pooled, params, nbatch, hwl, block_target=4096):
    m = pooled.shape[0]
    bm = _pick_block_rows(m, target=block_target,
                          min_blocks=_num_tensorcores())
    nblk = pl.cdiv(m, bm)
    kern = functools.partial(_vox_head_kernel, bm=bm, hwl=hwl, nbatch=nbatch)
    logits_t, psums = pl.pallas_call(
        kern,
        out_shape=(
            jax.ShapeDtypeStruct((NCLASSES, m), jnp.float32),
            jax.ShapeDtypeStruct((nblk, nbatch, OUT_PT), jnp.float32),
        ),
        grid=(nblk,),
        in_specs=[
            pl.BlockSpec((bm, OUT_PT), lambda i: (i, 0)),        # voxel features
            pl.BlockSpec((OUT_PT, COMPRE), lambda i: (0, 0)),    # wc (resident)
            pl.BlockSpec((1, COMPRE), lambda i: (0, 0)),         # bc
            pl.BlockSpec((NCLASSES, COMPRE), lambda i: (0, 0)),  # wo^T (resident)
            pl.BlockSpec((NCLASSES, 1), lambda i: (0, 0)),       # bo (column)
        ],
        out_specs=(
            pl.BlockSpec((NCLASSES, bm), lambda i: (0, i)),          # logits^T
            pl.BlockSpec((1, nbatch, OUT_PT), lambda i: (i, 0, 0)),  # partial sums
        ),
        compiler_params=pltpu.CompilerParams(
            dimension_semantics=("parallel",),
            vmem_limit_bytes=VMEM_LIMIT),
    )(pooled, params["wc"], params["bc"], params["wo_t"], params["bo_col"])
    return logits_t, psums


# --------------------------------------------------------------------------
# Deterministic parameter construction (BatchNorm folded into Linear weights)
# --------------------------------------------------------------------------
def _linear_init(key, i, o, scale=0.1):
    kw, kb = jax.random.split(key)
    w = scale * jax.random.normal(kw, (i, o), jnp.float32)
    b = 0.01 * jax.random.normal(kb, (o,), jnp.float32)
    return w, b


def _bn_affine(key, c, eps=1e-5):
    kg, kb = jax.random.split(key)
    gamma = 1.0 + 0.1 * jax.random.normal(kg, (c,), jnp.float32)
    beta = 0.1 * jax.random.normal(kb, (c,), jnp.float32)
    mean = jnp.zeros((c,), jnp.float32)
    var = jnp.ones((c,), jnp.float32)
    s = gamma / jnp.sqrt(var + eps)
    t = beta - mean * s
    return s, t


def init_params(key):
    ks = jax.random.split(key, 9)
    h1 = 32
    # PPmodel: BN(fea) -> Linear -> BN -> ReLU -> Linear -> BN -> ReLU -> Linear
    s0, t0 = _bn_affine(ks[0], FEA_DIM)
    w1, b1 = _linear_init(ks[1], FEA_DIM, h1)
    s1, t1 = _bn_affine(ks[2], h1)
    w2, b2 = _linear_init(ks[3], h1, HID)
    s2, t2 = _bn_affine(ks[4], HID)
    w3, b3 = _linear_init(ks[5], HID, OUT_PT)
    # fold BN0 (pre) and BN1 (post) into Linear1; BN2 (post) into Linear2
    w1f = (s0[:, None] * w1) * s1[None, :]
    b1f = (t0 @ w1 + b1) * s1 + t1
    w2f = w2 * s2[None, :]
    b2f = b2 * s2 + t2
    # zero-pad first hidden layer 32 -> 64: padded channels are relu(0)=0 and
    # hit zero rows of w2, so the result is unchanged but MXU columns are fuller.
    w1p = jnp.pad(w1f, ((0, 0), (0, HID - h1)))
    b1p = jnp.pad(b1f, (0, HID - h1))
    w2p = jnp.pad(w2f, ((0, HID - h1), (0, 0)))
    b_pt = jnp.stack([b1p, b2f, b3], axis=0)                     # (3, 64)
    # feature compression Linear + ReLU
    wc, bc = _linear_init(ks[6], OUT_PT, COMPRE)
    # classification head (dense 1x1x1 stand-in for the spconv segmentator)
    wo, bo = _linear_init(ks[7], COMPRE, NCLASSES)
    # weather classification branch (clf_v14 stand-in)
    ww, bw = _linear_init(ks[8], OUT_PT, NWEATHER)
    bf = jnp.bfloat16
    return dict(
        w1=w1p.astype(bf), w2=w2p.astype(bf), w3=w3.astype(bf),
        b_pt=b_pt.astype(jnp.float32),
        wc=wc.astype(bf), bc=bc.reshape(1, COMPRE).astype(jnp.float32),
        wo_t=wo.T.astype(bf), bo_col=bo.reshape(NCLASSES, 1).astype(jnp.float32),
        w_weather=ww, b_weather=bw,
    )


# --------------------------------------------------------------------------
# Forward pass of cylinder_asym_clf_v14
# --------------------------------------------------------------------------
def cylinder_asym_forward(params, train_pt_fea_ten, train_vox_ten, batch_size,
                          sparse_shape=(16, 16, 4)):
    H, W, L = sparse_shape
    hwl = H * W * L

    # --- cylinder_3d_generator -------------------------------------------
    pts = jnp.concatenate(train_pt_fea_ten, axis=0)               # (N, FEA_DIM)
    vox = jnp.concatenate(train_vox_ten, axis=0)                   # (N, 3) int32
    batch_idx = jnp.concatenate(
        [jnp.full((p.shape[0],), i, jnp.int32)
         for i, p in enumerate(train_pt_fea_ten)], axis=0)

    # flat voxel id; sort points by voxel so the segment reduction is sorted
    flat_ids = ((batch_idx * H + vox[:, 0]) * W + vox[:, 1]) * L + vox[:, 2]
    order = jnp.argsort(flat_ids)
    flat_ids = flat_ids[order]
    pts = pts[order]

    # fused point-wise MLP (single Pallas kernel, f32 in / bf16 out)
    pt_fea = point_mlp(pts, params)                                # (N, 64) bf16

    # scatter-max voxel pooling (torch_scatter.scatter_max equivalent) kept in
    # bf16 (max of bf16 values is exact); empty voxels are -inf, fixed up
    # inside the voxel-head kernel.
    # TODO(synk): replace the dense sorted segment_max with a Pallas segmented
    # reduction over occupied voxels only (scalar-prefetched segment offsets).
    num_vox = batch_size * hwl
    pooled = jax.ops.segment_max(pt_fea, flat_ids,
                                 num_segments=num_vox,
                                 indices_are_sorted=True)          # (num_vox, 64)

    # --- cylinder_3d_spconv_seg ------------------------------------------
    # TODO(synk): asymmetric spconv submanifold 3D convolutions have no clean
    # Pallas equivalent; replaced by a fused dense 1x1x1 (compression + head)
    # Pallas kernel over the voxel grid (which also emits per-batch feature
    # sums for the weather branch).
    logits_t, psums = vox_head(pooled, params, batch_size, hwl)    # (C, num_vox)
    spatial_features = jnp.transpose(
        logits_t.reshape(NCLASSES, batch_size, H, W, L), (1, 0, 2, 3, 4))

    # weather classification branch: per-batch global mean of pooled voxel
    # features (partial sums already computed in-kernel) -> tiny linear head.
    gpool = psums.sum(axis=0) / float(hwl)                          # (B, 64) f32
    weather_result = gpool @ params["w_weather"] + params["b_weather"]

    return spatial_features, weather_result


# --------------------------------------------------------------------------
if __name__ == "__main__":
    key = jax.random.PRNGKey(0)
    k_par, k_pts, k_vox = jax.random.split(key, 3)

    batch_size = 2
    n_pts_per_batch = 128
    sparse_shape = (16, 16, 4)
    H, W, L = sparse_shape

    params = init_params(k_par)

    # deterministic synthetic inputs: per-batch point features / voxel coords
    pt_keys = jax.random.split(k_pts, batch_size)
    vox_keys = jax.random.split(k_vox, batch_size)
    train_pt_fea_ten = [
        jax.random.normal(pt_keys[i], (n_pts_per_batch, FEA_DIM), jnp.float32)
        for i in range(batch_size)
    ]
    train_vox_ten = [
        jnp.stack([
            jax.random.randint(jax.random.fold_in(vox_keys[i], 0),
                               (n_pts_per_batch,), 0, H),
            jax.random.randint(jax.random.fold_in(vox_keys[i], 1),
                               (n_pts_per_batch,), 0, W),
            jax.random.randint(jax.random.fold_in(vox_keys[i], 2),
                               (n_pts_per_batch,), 0, L),
        ], axis=1).astype(jnp.int32)
        for i in range(batch_size)
    ]

    spatial, weather = cylinder_asym_forward(
        params, train_pt_fea_ten, train_vox_ten, batch_size, sparse_shape)
    spatial, weather = jax.block_until_ready((spatial, weather))

    assert spatial.shape == (batch_size, NCLASSES, H, W, L), spatial.shape
    assert weather.shape == (batch_size, NWEATHER), weather.shape
    assert bool(jnp.all(jnp.isfinite(spatial)))
    assert bool(jnp.all(jnp.isfinite(weather)))
    print("KERNEL_OK")
</pallas_src>

<mosaic_0001>
module attributes {stable_mosaic.version = 11 : i64} {
  func.func @_pt_mlp_kernel(%arg0: i32, %arg1: memref<256x8xf32, #tpu.memory_space<vmem>>, %arg2: memref<8x64xbf16, #tpu.memory_space<vmem>>, %arg3: memref<64x64xbf16, #tpu.memory_space<vmem>>, %arg4: memref<64x64xbf16, #tpu.memory_space<vmem>>, %arg5: memref<3x64xf32, #tpu.memory_space<vmem>>, %arg6: memref<256x64xbf16, #tpu.memory_space<vmem>>) attributes {dimension_semantics = [#tpu.dimension_semantics<parallel>], iteration_bounds = array<i64: 1>, scalar_prefetch = 0 : i64, scratch_operands = 0 : i64, tpu.core_type = #tpu.core_type<tc>, window_params = [{transform_indices = @transform_0, window_bounds = array<i64: 256, 8>}, {pipeline_mode = #tpu.pipeline_mode<synchronous>, transform_indices = @transform_1, window_bounds = array<i64: 8, 64>}, {pipeline_mode = #tpu.pipeline_mode<synchronous>, transform_indices = @transform_2, window_bounds = array<i64: 64, 64>}, {pipeline_mode = #tpu.pipeline_mode<synchronous>, transform_indices = @transform_3, window_bounds = array<i64: 64, 64>}, {pipeline_mode = #tpu.pipeline_mode<synchronous>, transform_indices = @transform_4, window_bounds = array<i64: 3, 64>}, {transform_indices = @transform_5, window_bounds = array<i64: 256, 64>}]} {
    %c0 = arith.constant 0 : index
    %c0_0 = arith.constant 0 : index
    %0 = vector.load %arg1[%c0, %c0_0] : memref<256x8xf32, #tpu.memory_space<vmem>>, vector<256x8xf32>
    %1 = arith.truncf %0 : vector<256x8xf32> to vector<256x8xbf16>
    %c0_1 = arith.constant 0 : index
    %c0_2 = arith.constant 0 : index
    %2 = vector.load %arg2[%c0_1, %c0_2] : memref<8x64xbf16, #tpu.memory_space<vmem>>, vector<8x64xbf16>
    %cst = arith.constant dense<0.000000e+00> : vector<256x64xf32>
    %3 = tpu.matmul %1, %2, %cst {dimension_numbers = #tpu.dot_dimension_numbers<[1], [0], [0], [1], [0, 0, 1, 1], [], []>} : vector<256x8xbf16>, vector<8x64xbf16>, vector<256x64xf32> -> vector<256x64xf32>
    %c0_3 = arith.constant 0 : index
    %c0_4 = arith.constant 0 : index
    %4 = vector.load %arg5[%c0_3, %c0_4] : memref<3x64xf32, #tpu.memory_space<vmem>>, vector<1x64xf32>
    %5 = vector.broadcast %4 : vector<1x64xf32> to vector<256x64xf32>
    %6 = arith.addf %3, %5 : vector<256x64xf32>
    %cst_5 = arith.constant 0.000000e+00 : f32
    %7 = vector.broadcast %cst_5 : f32 to vector<256x64xf32>
    %8 = arith.maximumf %6, %7 : vector<256x64xf32>
    %9 = arith.truncf %8 : vector<256x64xf32> to vector<256x64xbf16>
    %c0_6 = arith.constant 0 : index
    %c0_7 = arith.constant 0 : index
    %10 = vector.load %arg3[%c0_6, %c0_7] : memref<64x64xbf16, #tpu.memory_space<vmem>>, vector<64x64xbf16>
    %cst_8 = arith.constant dense<0.000000e+00> : vector<256x64xf32>
    %11 = tpu.matmul %9, %10, %cst_8 {dimension_numbers = #tpu.dot_dimension_numbers<[1], [0], [0], [1], [0, 0, 1, 1], [], []>} : vector<256x64xbf16>, vector<64x64xbf16>, vector<256x64xf32> -> vector<256x64xf32>
    %c1 = arith.constant 1 : index
    %c0_9 = arith.constant 0 : index
    %12 = vector.load %arg5[%c1, %c0_9] : memref<3x64xf32, #tpu.memory_space<vmem>>, vector<1x64xf32>
    %13 = vector.broadcast %12 : vector<1x64xf32> to vector<256x64xf32>
    %14 = arith.addf %11, %13 : vector<256x64xf32>
    %cst_10 = arith.constant 0.000000e+00 : f32
    %15 = vector.broadcast %cst_10 : f32 to vector<256x64xf32>
    %16 = arith.maximumf %14, %15 : vector<256x64xf32>
    %17 = arith.truncf %16 : vector<256x64xf32> to vector<256x64xbf16>
    %c0_11 = arith.constant 0 : index
    %c0_12 = arith.constant 0 : index
    %18 = vector.load %arg4[%c0_11, %c0_12] : memref<64x64xbf16, #tpu.memory_space<vmem>>, vector<64x64xbf16>
    %cst_13 = arith.constant dense<0.000000e+00> : vector<256x64xf32>
    %19 = tpu.matmul %17, %18, %cst_13 {dimension_numbers = #tpu.dot_dimension_numbers<[1], [0], [0], [1], [0, 0, 1, 1], [], []>} : vector<256x64xbf16>, vector<64x64xbf16>, vector<256x64xf32> -> vector<256x64xf32>
    %c2 = arith.constant 2 : index
    %c0_14 = arith.constant 0 : index
    %20 = vector.load %arg5[%c2, %c0_14] : memref<3x64xf32, #tpu.memory_space<vmem>>, vector<1x64xf32>
    %21 = vector.broadcast %20 : vector<1x64xf32> to vector<256x64xf32>
    %22 = arith.addf %19, %21 : vector<256x64xf32>
    %23 = arith.truncf %22 : vector<256x64xf32> to vector<256x64xbf16>
    %c0_15 = arith.constant 0 : index
    %c0_16 = arith.constant 0 : index
    %24 = vector.load %arg6[%c0_15, %c0_16] : memref<256x64xbf16, #tpu.memory_space<vmem>>, vector<256x64xbf16>
    tpu.vector_store %arg6[%c0_15, %c0_16], %23 {strides = array<i32>} : memref<256x64xbf16, #tpu.memory_space<vmem>>, vector<256x64xbf16>,
    return
  }
  func.func @transform_0(%arg0: i32) -> (i32, i32) {
    %c0_i32 = arith.constant 0 : i32
    %c0_i32_0 = arith.constant 0 : i32
    return %arg0, %c0_i32 : i32, i32
  }
  func.func @transform_1(%arg0: i32) -> (i32, i32) {
    %c0_i32 = arith.constant 0 : i32
    %c0_i32_0 = arith.constant 0 : i32
    %c0_i32_1 = arith.constant 0 : i32
    return %c0_i32, %c0_i32_0 : i32, i32
  }
  func.func @transform_2(%arg0: i32) -> (i32, i32) {
    %c0_i32 = arith.constant 0 : i32
    %c0_i32_0 = arith.constant 0 : i32
    %c0_i32_1 = arith.constant 0 : i32
    return %c0_i32, %c0_i32_0 : i32, i32
  }
  func.func @transform_3(%arg0: i32) -> (i32, i32) {
    %c0_i32 = arith.constant 0 : i32
    %c0_i32_0 = arith.constant 0 : i32
    %c0_i32_1 = arith.constant 0 : i32
    return %c0_i32, %c0_i32_0 : i32, i32
  }
  func.func @transform_4(%arg0: i32) -> (i32, i32) {
    %c0_i32 = arith.constant 0 : i32
    %c0_i32_0 = arith.constant 0 : i32
    %c0_i32_1 = arith.constant 0 : i32
    return %c0_i32, %c0_i32_0 : i32, i32
  }
  func.func @transform_5(%arg0: i32) -> (i32, i32) {
    %c0_i32 = arith.constant 0 : i32
    %c0_i32_0 = arith.constant 0 : i32
    return %arg0, %c0_i32 : i32, i32
  }
}

</mosaic_0001>

<llo_original>
// kernel: tpu_custom_call.1
$region0: #{tpu_custom_call.1}
  #allocation0 [shape = 'u32[]', space=smem, size = 0x4, offset = 0x4, fixed_abs, tag = 'smem constant byte address 0x4 - core index']
  #allocation1 [shape = 'u32[72,128]{1,0:T(1,128)}', space=vmem, size = 0x9000, scoped, tag = 'internal scratch']
  %s0 = inlined_call_operand.vmem [shape: f32[256,8], index: 0, kind: input, shape index: {}]
  %s1 = inlined_call_operand.vmem [shape: bf16[8,64], index: 1, kind: input, shape index: {}]
  %s2 = inlined_call_operand.vmem [shape: bf16[64,64], index: 2, kind: input, shape index: {}]
  %s3 = inlined_call_operand.vmem [shape: bf16[64,64], index: 3, kind: input, shape index: {}]
  %s4 = inlined_call_operand.vmem [shape: f32[3,64], index: 4, kind: input, shape index: {}]
  %s5 = inlined_call_operand.vmem [shape: bf16[256,64], index: 5, kind: output, shape index: {}]
  %s6 = sld [smem:[#allocation0]]
  $region30: #{tpu_custom_call.1} parent=0
    _
  %s8 = ssub.s32 1, %s6
  %s9 = scalar_select 0, %s8, %s6
  // Predicated region
  $region2: #{tpu_custom_call.1} parent=0 // pred_check
    _
  $region3: #{tpu_custom_call.1} parent=0 // pred_check_branch
    %11 = sbr.rel (0) target = $region5
  $region4: #{tpu_custom_call.1} parent=0 // pred_region
    _
  $region5: #{tpu_custom_call.1} parent=0 // pred_fallthru
    _
  // Predicated region
  $region6: #{tpu_custom_call.1} parent=0 // pred_check
    _
  $region7: #{tpu_custom_call.1} parent=0 // pred_check_branch
    %13 = sbr.rel (0) target = $region9
  $region8: #{tpu_custom_call.1} parent=0 // pred_region
    _
  $region9: #{tpu_custom_call.1} parent=0 // pred_fallthru
    _
  // Predicated region
  $region10: #{tpu_custom_call.1} parent=0 // pred_check
    _
  $region11: #{tpu_custom_call.1} parent=0 // pred_check_branch
    %15 = sbr.rel (0) target = $region13
  $region12: #{tpu_custom_call.1} parent=0 // pred_region
    _
  $region13: #{tpu_custom_call.1} parent=0 // pred_fallthru
    _
  // Predicated region
  $region14: #{tpu_custom_call.1} parent=0 // pred_check
    _
  $region15: #{tpu_custom_call.1} parent=0 // pred_check_branch
    %17 = sbr.rel (0) target = $region17
  $region16: #{tpu_custom_call.1} parent=0 // pred_region
    _
  $region17: #{tpu_custom_call.1} parent=0 // pred_fallthru
    _
  // Predicated region
  $region18: #{tpu_custom_call.1} parent=0 // pred_check
    _
  $region19: #{tpu_custom_call.1} parent=0 // pred_check_branch
    %19 = sbr.rel (0) target = $region21
  $region20: #{tpu_custom_call.1} parent=0 // pred_region
    _
  $region21: #{tpu_custom_call.1} parent=0 // pred_fallthru
    _
  %v21 = vld [vmem:[%s0] sm:$0xff]
  %v22 = vld [vmem:[%s0 + $0x8] sm:$0xff]
  %v23 = vld [vmem:[%s0 + $0x10] sm:$0xff]
  %v24 = vld [vmem:[%s0 + $0x18] sm:$0xff]
  %v25 = vld [vmem:[%s0 + $0x20] sm:$0xff]
  %v26 = vld [vmem:[%s0 + $0x28] sm:$0xff]
  %v27 = vld [vmem:[%s0 + $0x30] sm:$0xff]
  %v28 = vld [vmem:[%s0 + $0x38] sm:$0xff]
  %v29 = vld [vmem:[%s0 + $0x40] sm:$0xff]
  %v30 = vld [vmem:[%s0 + $0x48] sm:$0xff]
  %v31 = vld [vmem:[%s0 + $0x50] sm:$0xff]
  %v32 = vld [vmem:[%s0 + $0x58] sm:$0xff]
  %v33 = vld [vmem:[%s0 + $0x60] sm:$0xff]
  %v34 = vld [vmem:[%s0 + $0x68] sm:$0xff]
  %v35 = vld [vmem:[%s0 + $0x70] sm:$0xff]
  %v36 = vld [vmem:[%s0 + $0x78] sm:$0xff]
  %v37 = vld [vmem:[%s0 + $0x80] sm:$0xff]
  %v38 = vld [vmem:[%s0 + $0x88] sm:$0xff]
  %v39 = vld [vmem:[%s0 + $0x90] sm:$0xff]
  %v40 = vld [vmem:[%s0 + $0x98] sm:$0xff]
  %v41 = vld [vmem:[%s0 + $0xa0] sm:$0xff]
  %v42 = vld [vmem:[%s0 + $0xa8] sm:$0xff]
  %v43 = vld [vmem:[%s0 + $0xb0] sm:$0xff]
  %v44 = vld [vmem:[%s0 + $0xb8] sm:$0xff]
  %v45 = vld [vmem:[%s0 + $0xc0] sm:$0xff]
  %v46 = vld [vmem:[%s0 + $0xc8] sm:$0xff]
  %v47 = vld [vmem:[%s0 + $0xd0] sm:$0xff]
  %v48 = vld [vmem:[%s0 + $0xd8] sm:$0xff]
  %v49 = vld [vmem:[%s0 + $0xe0] sm:$0xff]
  %v50 = vld [vmem:[%s0 + $0xe8] sm:$0xff]
  %v51 = vld [vmem:[%s0 + $0xf0] sm:$0xff]
  %v52 = vld [vmem:[%s0 + $0xf8] sm:$0xff]
  %v53 = vpack.c.bf16 %v22, %v21
  %v54 = vpack.c.bf16 %v24, %v23
  %v55 = vpack.c.bf16 %v26, %v25
  %v56 = vpack.c.bf16 %v28, %v27
  %v57 = vpack.c.bf16 %v30, %v29
  %v58 = vpack.c.bf16 %v32, %v31
  %v59 = vpack.c.bf16 %v34, %v33
  %v60 = vpack.c.bf16 %v36, %v35
  %v61 = vpack.c.bf16 %v38, %v37
  %v62 = vpack.c.bf16 %v40, %v39
  %v63 = vpack.c.bf16 %v42, %v41
  %v64 = vpack.c.bf16 %v44, %v43
  %v65 = vpack.c.bf16 %v46, %v45
  %v66 = vpack.c.bf16 %v48, %v47
  %v67 = vpack.c.bf16 %v50, %v49
  %v68 = vpack.c.bf16 %v52, %v51
  %v69 = vld [vmem:[%s1] sm:$0xf]
  %v70 = vld [vmem:[%s4] sm:$0x1]
  %v71 = vperm.slane %v70, 0
  %vm72 = vcmask 64512
  %v74 = vsel %vm72, %v53, 0
  %v77 = vsel %vm72, %v54, 0
  %v80 = vsel %vm72, %v55, 0
  %v83 = vsel %vm72, %v56, 0
  %v86 = vsel %vm72, %v57, 0
  %v89 = vsel %vm72, %v58, 0
  %v92 = vsel %vm72, %v59, 0
  %v95 = vsel %vm72, %v60, 0
  %v98 = vsel %vm72, %v61, 0
  %v101 = vsel %vm72, %v62, 0
  %v104 = vsel %vm72, %v63, 0
  %v107 = vsel %vm72, %v64, 0
  %v110 = vsel %vm72, %v65, 0
  %v113 = vsel %vm72, %v66, 0
  %v116 = vsel %vm72, %v67, 0
  %v119 = vsel %vm72, %v68, 0
  %vm121 = vcmask 1043456
  %v123 = vsel %vm121, %v69, 0
  %125 = vmatpush.bf16.msra.mxu0 0
  %126 = vmatpush.bf16.msra.mxu0 0
  %127 = vmatpush.bf16.msra.mxu0 0
  %128 = vmatpush.bf16.msra.mxu0 0
  %129 = vmatpush.bf16.msra.mxu0 0
  %130 = vmatpush.bf16.msra.mxu0 0
  %131 = vmatpush.bf16.msra.mxu0 0
  %132 = vmatpush.bf16.msra.mxu0 %v123
  %133 = vmatmul.bf16.gmra.mxu0 %v74
  %v134 = vpop.f32.mrf.mxu0
  %v135 = vadd.f32 %v71, %v134
  %v136 = vpop.f32.mrf.mxu0
  %v137 = vadd.f32 %v71, %v136
  %138 = vmatmul.bf16.gmra.mxu0 %v77
  %v139 = vpop.f32.mrf.mxu0
  %v140 = vadd.f32 %v71, %v139
  %v141 = vpop.f32.mrf.mxu0
  %v142 = vadd.f32 %v71, %v141
  %143 = vmatmul.bf16.gmra.mxu0 %v80
  %v144 = vpop.f32.mrf.mxu0
  %v145 = vadd.f32 %v71, %v144
  %v146 = vpop.f32.mrf.mxu0
  %v147 = vadd.f32 %v71, %v146
  %148 = vmatmul.bf16.gmra.mxu0 %v83
  %v149 = vpop.f32.mrf.mxu0
  %v150 = vadd.f32 %v71, %v149
  %v151 = vpop.f32.mrf.mxu0
  %v152 = vadd.f32 %v71, %v151
  %153 = vmatmul.bf16.gmra.mxu0 %v86
  %v154 = vpop.f32.mrf.mxu0
  %v155 = vadd.f32 %v71, %v154
  %v156 = vpop.f32.mrf.mxu0
  %v157 = vadd.f32 %v71, %v156
  %158 = vmatmul.bf16.gmra.mxu0 %v89
  %v159 = vpop.f32.mrf.mxu0
  %v160 = vadd.f32 %v71, %v159
  %v161 = vpop.f32.mrf.mxu0
  %v162 = vadd.f32 %v71, %v161
  %163 = vmatmul.bf16.gmra.mxu0 %v92
  %v164 = vpop.f32.mrf.mxu0
  %v165 = vadd.f32 %v71, %v164
  %v166 = vpop.f32.mrf.mxu0
  %v167 = vadd.f32 %v71, %v166
  %168 = vmatmul.bf16.gmra.mxu0 %v95
  %v169 = vpop.f32.mrf.mxu0
  %v170 = vadd.f32 %v71, %v169
  %v171 = vpop.f32.mrf.mxu0
  %v172 = vadd.f32 %v71, %v171
  %173 = vmatmul.bf16.gmra.mxu0 %v98
  %v174 = vpop.f32.mrf.mxu0
  %v175 = vadd.f32 %v71, %v174
  %v176 = vpop.f32.mrf.mxu0
  %v177 = vadd.f32 %v71, %v176
  %178 = vmatmul.bf16.gmra.mxu0 %v101
  %v179 = vpop.f32.mrf.mxu0
  %v180 = vadd.f32 %v71, %v179
  %v181 = vpop.f32.mrf.mxu0
  %v182 = vadd.f32 %v71, %v181
  %183 = vmatmul.bf16.gmra.mxu0 %v104
  %v184 = vpop.f32.mrf.mxu0
  %v185 = vadd.f32 %v71, %v184
  %v186 = vpop.f32.mrf.mxu0
  %v187 = vadd.f32 %v71, %v186
  %188 = vmatmul.bf16.gmra.mxu0 %v107
  %v189 = vpop.f32.mrf.mxu0
  %v190 = vadd.f32 %v71, %v189
  %v191 = vpop.f32.mrf.mxu0
  %v192 = vadd.f32 %v71, %v191
  %193 = vmatmul.bf16.gmra.mxu0 %v110
  %v194 = vpop.f32.mrf.mxu0
  %v195 = vadd.f32 %v71, %v194
  %v196 = vpop.f32.mrf.mxu0
  %v197 = vadd.f32 %v71, %v196
  %198 = vmatmul.bf16.gmra.mxu0 %v113
  %v199 = vpop.f32.mrf.mxu0
  %v200 = vadd.f32 %v71, %v199
  %v201 = vpop.f32.mrf.mxu0
  %v202 = vadd.f32 %v71, %v201
  %203 = vmatmul.bf16.gmra.mxu0 %v116
  %v204 = vpop.f32.mrf.mxu0
  %v205 = vadd.f32 %v71, %v204
  %v206 = vpop.f32.mrf.mxu0
  %v207 = vadd.f32 %v71, %v206
  %208 = vmatmul.bf16.gmra.mxu0 %v119
  %v209 = vpop.f32.mrf.mxu0
  %v210 = vadd.f32 %v71, %v209
  %v211 = vpop.f32.mrf.mxu0
  %v212 = vadd.f32 %v71, %v211
  %213 = vdwg.mxu0
  %v214 = vmax.f32 %v135, 0.0
  %v215 = vmax.f32 %v137, 0.0
  %v216 = vmax.f32 %v140, 0.0
  %v217 = vmax.f32 %v142, 0.0
  %v218 = vmax.f32 %v145, 0.0
  %v219 = vmax.f32 %v147, 0.0
  %v220 = vmax.f32 %v150, 0.0
  %v221 = vmax.f32 %v152, 0.0
  %v222 = vmax.f32 %v155, 0.0
  %v223 = vmax.f32 %v157, 0.0
  %v224 = vmax.f32 %v160, 0.0
  %v225 = vmax.f32 %v162, 0.0
  %v226 = vmax.f32 %v165, 0.0
  %v227 = vmax.f32 %v167, 0.0
  %v228 = vmax.f32 %v170, 0.0
  %v229 = vmax.f32 %v172, 0.0
  %v230 = vmax.f32 %v175, 0.0
  %v231 = vmax.f32 %v177, 0.0
  %v232 = vmax.f32 %v180, 0.0
  %v233 = vmax.f32 %v182, 0.0
  %v234 = vmax.f32 %v185, 0.0
  %v235 = vmax.f32 %v187, 0.0
  %v236 = vmax.f32 %v190, 0.0
  %v237 = vmax.f32 %v192, 0.0
  %v238 = vmax.f32 %v195, 0.0
  %v239 = vmax.f32 %v197, 0.0
  %v240 = vmax.f32 %v200, 0.0
  %v241 = vmax.f32 %v202, 0.0
  %v242 = vmax.f32 %v205, 0.0
  %v243 = vmax.f32 %v207, 0.0
  %v244 = vmax.f32 %v210, 0.0
  %v245 = vmax.f32 %v212, 0.0
  %v246 = vpack.c.bf16 %v215, %v214
  %v247 = vpack.c.bf16 %v217, %v216
  %v248 = vpack.c.bf16 %v219, %v218
  %v249 = vpack.c.bf16 %v221, %v220
  %v250 = vpack.c.bf16 %v223, %v222
  %v251 = vpack.c.bf16 %v225, %v224
  %v252 = vpack.c.bf16 %v227, %v226
  %v253 = vpack.c.bf16 %v229, %v228
  %v254 = vpack.c.bf16 %v231, %v230
  %v255 = vpack.c.bf16 %v233, %v232
  %v256 = vpack.c.bf16 %v235, %v234
  %v257 = vpack.c.bf16 %v237, %v236
  %v258 = vpack.c.bf16 %v239, %v238
  %v259 = vpack.c.bf16 %v241, %v240
  %v260 = vpack.c.bf16 %v243, %v242
  %v261 = vpack.c.bf16 %v245, %v244
  %v262 = vld [vmem:[%s2] sm:$0xf]
  %v263 = vld [vmem:[%s2 + $0x4] sm:$0xf]
  %v264 = vld [vmem:[%s2 + $0x8] sm:$0xf]
  %v265 = vld [vmem:[%s2 + $0xc] sm:$0xf]
  %v266 = vld [vmem:[%s2 + $0x10] sm:$0xf]
  %v267 = vld [vmem:[%s2 + $0x14] sm:$0xf]
  %v268 = vld [vmem:[%s2 + $0x18] sm:$0xf]
  %v269 = vld [vmem:[%s2 + $0x1c] sm:$0xf]
  %v270 = vld [vmem:[%s4 + $0x1] sm:$0x1]
  %v271 = vperm.slane %v270, 0
  %v280 = vunpack.c.l.b16 %v262
  %v281 = vunpack.c.l.b16 %v263
  %v282 = vunpack.c.l.b16 %v264
  %v283 = vunpack.c.l.b16 %v265
  %v284 = vunpack.c.l.b16 %v266
  %v285 = vunpack.c.l.b16 %v267
  %v286 = vunpack.c.l.b16 %v268
  %v287 = vunpack.c.l.b16 %v269
  %v288 = vpack.c.b16 %v281, %v280
  %v289 = vpack.c.b16 %v283, %v282
  %v290 = vpack.c.b16 %v285, %v284
  %v291 = vpack.c.b16 %v287, %v286
  %vm296 = vcmask 523264
  %v298 = vsel %vm296, %v246, 0
  %v301 = vsel %vm296, %v247, 0
  %v304 = vsel %vm296, %v248, 0
  %v307 = vsel %vm296, %v249, 0
  %v310 = vsel %vm296, %v250, 0
  %v313 = vsel %vm296, %v251, 0
  %v316 = vsel %vm296, %v252, 0
  %v319 = vsel %vm296, %v253, 0
  %v322 = vsel %vm296, %v254, 0
  %v325 = vsel %vm296, %v255, 0
  %v328 = vsel %vm296, %v256, 0
  %v331 = vsel %vm296, %v257, 0
  %v334 = vsel %vm296, %v258, 0
  %v337 = vsel %vm296, %v259, 0
  %v340 = vsel %vm296, %v260, 0
  %v343 = vsel %vm296, %v261, 0
  %345 = vmatpush.bf16.msra.mxu0 0
  %346 = vmatpush.bf16.msra.mxu0 0
  %347 = vmatpush.bf16.msra.mxu0 0
  %348 = vmatpush.bf16.msra.mxu0 0
  %349 = vmatpush.bf16.msra.mxu0 %v291
  %350 = vmatpush.bf16.msra.mxu0 %v290
  %351 = vmatpush.bf16.msra.mxu0 %v289
  %352 = vmatpush.bf16.msra.mxu0 %v288
  %353 = vmatmul.bf16.gmra.mxu0 %v298
  %v354 = vpop.f32.mrf.mxu0
  %v355 = vadd.f32 %v271, %v354
  %v356 = vpop.f32.mrf.mxu0
  %v357 = vadd.f32 %v271, %v356
  %358 = vmatmul.bf16.gmra.mxu0 %v301
  %v359 = vpop.f32.mrf.mxu0
  %v360 = vadd.f32 %v271, %v359
  %v361 = vpop.f32.mrf.mxu0
  %v362 = vadd.f32 %v271, %v361
  %363 = vmatmul.bf16.gmra.mxu0 %v304
  %v364 = vpop.f32.mrf.mxu0
  %v365 = vadd.f32 %v271, %v364
  %v366 = vpop.f32.mrf.mxu0
  %v367 = vadd.f32 %v271, %v366
  %368 = vmatmul.bf16.gmra.mxu0 %v307
  %v369 = vpop.f32.mrf.mxu0
  %v370 = vadd.f32 %v271, %v369
  %v371 = vpop.f32.mrf.mxu0
  %v372 = vadd.f32 %v271, %v371
  %373 = vmatmul.bf16.gmra.mxu0 %v310
  %v374 = vpop.f32.mrf.mxu0
  %v375 = vadd.f32 %v271, %v374
  %v376 = vpop.f32.mrf.mxu0
  %v377 = vadd.f32 %v271, %v376
  %378 = vmatmul.bf16.gmra.mxu0 %v313
  %v379 = vpop.f32.mrf.mxu0
  %v380 = vadd.f32 %v271, %v379
  %v381 = vpop.f32.mrf.mxu0
  %v382 = vadd.f32 %v271, %v381
  %383 = vmatmul.bf16.gmra.mxu0 %v316
  %v384 = vpop.f32.mrf.mxu0
  %v385 = vadd.f32 %v271, %v384
  %v386 = vpop.f32.mrf.mxu0
  %v387 = vadd.f32 %v271, %v386
  %388 = vmatmul.bf16.gmra.mxu0 %v319
  %v389 = vpop.f32.mrf.mxu0
  %v390 = vadd.f32 %v271, %v389
  %v391 = vpop.f32.mrf.mxu0
  %v392 = vadd.f32 %v271, %v391
  %393 = vmatmul.bf16.gmra.mxu0 %v322
  %v394 = vpop.f32.mrf.mxu0
  %v395 = vadd.f32 %v271, %v394
  %v396 = vpop.f32.mrf.mxu0
  %v397 = vadd.f32 %v271, %v396
  %398 = vmatmul.bf16.gmra.mxu0 %v325
  %v399 = vpop.f32.mrf.mxu0
  %v400 = vadd.f32 %v271, %v399
  %v401 = vpop.f32.mrf.mxu0
  %v402 = vadd.f32 %v271, %v401
  %403 = vmatmul.bf16.gmra.mxu0 %v328
  %v404 = vpop.f32.mrf.mxu0
  %v405 = vadd.f32 %v271, %v404
  %v406 = vpop.f32.mrf.mxu0
  %v407 = vadd.f32 %v271, %v406
  %408 = vmatmul.bf16.gmra.mxu0 %v331
  %v409 = vpop.f32.mrf.mxu0
  %v410 = vadd.f32 %v271, %v409
  %v411 = vpop.f32.mrf.mxu0
  %v412 = vadd.f32 %v271, %v411
  %413 = vmatmul.bf16.gmra.mxu0 %v334
  %v414 = vpop.f32.mrf.mxu0
  %v415 = vadd.f32 %v271, %v414
  %v416 = vpop.f32.mrf.mxu0
  %v417 = vadd.f32 %v271, %v416
  %418 = vmatmul.bf16.gmra.mxu0 %v337
  %v419 = vpop.f32.mrf.mxu0
  %v420 = vadd.f32 %v271, %v419
  %v421 = vpop.f32.mrf.mxu0
  %v422 = vadd.f32 %v271, %v421
  %423 = vmatmul.bf16.gmra.mxu0 %v340
  %v424 = vpop.f32.mrf.mxu0
  %v425 = vadd.f32 %v271, %v424
  %v426 = vpop.f32.mrf.mxu0
  %v427 = vadd.f32 %v271, %v426
  %428 = vmatmul.bf16.gmra.mxu0 %v343
  %v429 = vpop.f32.mrf.mxu0
  %v430 = vadd.f32 %v271, %v429
  %v431 = vpop.f32.mrf.mxu0
  %v432 = vadd.f32 %v271, %v431
  %433 = vdwg.mxu0
  %v434 = vmax.f32 %v355, 0.0
  %v435 = vmax.f32 %v357, 0.0
  %v436 = vmax.f32 %v360, 0.0
  %v437 = vmax.f32 %v362, 0.0
  %v438 = vmax.f32 %v365, 0.0
  %v439 = vmax.f32 %v367, 0.0
  %v440 = vmax.f32 %v370, 0.0
  %v441 = vmax.f32 %v372, 0.0
  %v442 = vmax.f32 %v375, 0.0
  %v443 = vmax.f32 %v377, 0.0
  %v444 = vmax.f32 %v380, 0.0
  %v445 = vmax.f32 %v382, 0.0
  %v446 = vmax.f32 %v385, 0.0
  %v447 = vmax.f32 %v387, 0.0
  %v448 = vmax.f32 %v390, 0.0
  %v449 = vmax.f32 %v392, 0.0
  %v450 = vmax.f32 %v395, 0.0
  %v451 = vmax.f32 %v397, 0.0
  %v452 = vmax.f32 %v400, 0.0
  %v453 = vmax.f32 %v402, 0.0
  %v454 = vmax.f32 %v405, 0.0
  %v455 = vmax.f32 %v407, 0.0
  %v456 = vmax.f32 %v410, 0.0
  %v457 = vmax.f32 %v412, 0.0
  %v458 = vmax.f32 %v415, 0.0
  %v459 = vmax.f32 %v417, 0.0
  %v460 = vmax.f32 %v420, 0.0
  %v461 = vmax.f32 %v422, 0.0
  %v462 = vmax.f32 %v425, 0.0
  %v463 = vmax.f32 %v427, 0.0
  %v464 = vmax.f32 %v430, 0.0
  %v465 = vmax.f32 %v432, 0.0
  %v466 = vpack.c.bf16 %v435, %v434
  %v467 = vpack.c.bf16 %v437, %v436
  %v468 = vpack.c.bf16 %v439, %v438
  %v469 = vpack.c.bf16 %v441, %v440
  %v470 = vpack.c.bf16 %v443, %v442
  %v471 = vpack.c.bf16 %v445, %v444
  %v472 = vpack.c.bf16 %v447, %v446
  %v473 = vpack.c.bf16 %v449, %v448
  %v474 = vpack.c.bf16 %v451, %v450
  %v475 = vpack.c.bf16 %v453, %v452
  %v476 = vpack.c.bf16 %v455, %v454
  %v477 = vpack.c.bf16 %v457, %v456
  %v478 = vpack.c.bf16 %v459, %v458
  %v479 = vpack.c.bf16 %v461, %v460
  %v480 = vpack.c.bf16 %v463, %v462
  %v481 = vpack.c.bf16 %v465, %v464
  %v482 = vld [vmem:[%s3] sm:$0xf]
  %v483 = vld [vmem:[%s3 + $0x4] sm:$0xf]
  %v484 = vld [vmem:[%s3 + $0x8] sm:$0xf]
  %v485 = vld [vmem:[%s3 + $0xc] sm:$0xf]
  %v486 = vld [vmem:[%s3 + $0x10] sm:$0xf]
  %v487 = vld [vmem:[%s3 + $0x14] sm:$0xf]
  %v488 = vld [vmem:[%s3 + $0x18] sm:$0xf]
  %v489 = vld [vmem:[%s3 + $0x1c] sm:$0xf]
  %v490 = vld [vmem:[%s4 + $0x2] sm:$0x1]
  %v491 = vperm.slane %v490, 0
  %v500 = vunpack.c.l.b16 %v482
  %v501 = vunpack.c.l.b16 %v483
  %v502 = vunpack.c.l.b16 %v484
  %v503 = vunpack.c.l.b16 %v485
  %v504 = vunpack.c.l.b16 %v486
  %v505 = vunpack.c.l.b16 %v487
  %v506 = vunpack.c.l.b16 %v488
  %v507 = vunpack.c.l.b16 %v489
  %v508 = vpack.c.b16 %v501, %v500
  %v509 = vpack.c.b16 %v503, %v502
  %v510 = vpack.c.b16 %v505, %v504
  %v511 = vpack.c.b16 %v507, %v506
  %v517 = vsel %vm296, %v466, 0
  %v520 = vsel %vm296, %v467, 0
  %v523 = vsel %vm296, %v468, 0
  %v526 = vsel %vm296, %v469, 0
  %v529 = vsel %vm296, %v470, 0
  %v532 = vsel %vm296, %v471, 0
  %v535 = vsel %vm296, %v472, 0
  %v538 = vsel %vm296, %v473, 0
  %v541 = vsel %vm296, %v474, 0
  %v544 = vsel %vm296, %v475, 0
  %v547 = vsel %vm296, %v476, 0
  %v550 = vsel %vm296, %v477, 0
  %v553 = vsel %vm296, %v478, 0
  %v556 = vsel %vm296, %v479, 0
  %v559 = vsel %vm296, %v480, 0
  %v562 = vsel %vm296, %v481, 0
  %564 = vmatpush.bf16.msra.mxu0 0
  %565 = vmatpush.bf16.msra.mxu0 0
  %566 = vmatpush.bf16.msra.mxu0 0
  %567 = vmatpush.bf16.msra.mxu0 0
  %568 = vmatpush.bf16.msra.mxu0 %v511
  %569 = vmatpush.bf16.msra.mxu0 %v510
  %570 = vmatpush.bf16.msra.mxu0 %v509
  %571 = vmatpush.bf16.msra.mxu0 %v508
  %572 = vmatmul.bf16.gmra.mxu0 %v517
  %v573 = vpop.f32.mrf.mxu0
  %v574 = vadd.f32 %v491, %v573
  %v575 = vpop.f32.mrf.mxu0
  %v576 = vadd.f32 %v491, %v575
  %577 = vmatmul.bf16.gmra.mxu0 %v520
  %v578 = vpop.f32.mrf.mxu0
  %v579 = vadd.f32 %v491, %v578
  %v580 = vpop.f32.mrf.mxu0
  %v581 = vadd.f32 %v491, %v580
  %582 = vmatmul.bf16.gmra.mxu0 %v523
  %v583 = vpop.f32.mrf.mxu0
  %v584 = vadd.f32 %v491, %v583
  %v585 = vpop.f32.mrf.mxu0
  %v586 = vadd.f32 %v491, %v585
  %587 = vmatmul.bf16.gmra.mxu0 %v526
  %v588 = vpop.f32.mrf.mxu0
  %v589 = vadd.f32 %v491, %v588
  %v590 = vpop.f32.mrf.mxu0
  %v591 = vadd.f32 %v491, %v590
  %592 = vmatmul.bf16.gmra.mxu0 %v529
  %v593 = vpop.f32.mrf.mxu0
  %v594 = vadd.f32 %v491, %v593
  %v595 = vpop.f32.mrf.mxu0
  %v596 = vadd.f32 %v491, %v595
  %597 = vmatmul.bf16.gmra.mxu0 %v532
  %v598 = vpop.f32.mrf.mxu0
  %v599 = vadd.f32 %v491, %v598
  %v600 = vpop.f32.mrf.mxu0
  %v601 = vadd.f32 %v491, %v600
  %602 = vmatmul.bf16.gmra.mxu0 %v535
  %v603 = vpop.f32.mrf.mxu0
  %v604 = vadd.f32 %v491, %v603
  %v605 = vpop.f32.mrf.mxu0
  %v606 = vadd.f32 %v491, %v605
  %607 = vmatmul.bf16.gmra.mxu0 %v538
  %v608 = vpop.f32.mrf.mxu0
  %v609 = vadd.f32 %v491, %v608
  %v610 = vpop.f32.mrf.mxu0
  %v611 = vadd.f32 %v491, %v610
  %612 = vmatmul.bf16.gmra.mxu0 %v541
  %v613 = vpop.f32.mrf.mxu0
  %v614 = vadd.f32 %v491, %v613
  %v615 = vpop.f32.mrf.mxu0
  %v616 = vadd.f32 %v491, %v615
  %617 = vmatmul.bf16.gmra.mxu0 %v544
  %v618 = vpop.f32.mrf.mxu0
  %v619 = vadd.f32 %v491, %v618
  %v620 = vpop.f32.mrf.mxu0
  %v621 = vadd.f32 %v491, %v620
  %622 = vmatmul.bf16.gmra.mxu0 %v547
  %v623 = vpop.f32.mrf.mxu0
  %v624 = vadd.f32 %v491, %v623
  %v625 = vpop.f32.mrf.mxu0
  %v626 = vadd.f32 %v491, %v625
  %627 = vmatmul.bf16.gmra.mxu0 %v550
  %v628 = vpop.f32.mrf.mxu0
  %v629 = vadd.f32 %v491, %v628
  %v630 = vpop.f32.mrf.mxu0
  %v631 = vadd.f32 %v491, %v630
  %632 = vmatmul.bf16.gmra.mxu0 %v553
  %v633 = vpop.f32.mrf.mxu0
  %v634 = vadd.f32 %v491, %v633
  %v635 = vpop.f32.mrf.mxu0
  %v636 = vadd.f32 %v491, %v635
  %637 = vmatmul.bf16.gmra.mxu0 %v556
  %v638 = vpop.f32.mrf.mxu0
  %v639 = vadd.f32 %v491, %v638
  %v640 = vpop.f32.mrf.mxu0
  %v641 = vadd.f32 %v491, %v640
  %642 = vmatmul.bf16.gmra.mxu0 %v559
  %v643 = vpop.f32.mrf.mxu0
  %v644 = vadd.f32 %v491, %v643
  %v645 = vpop.f32.mrf.mxu0
  %v646 = vadd.f32 %v491, %v645
  %647 = vmatmul.bf16.gmra.mxu0 %v562
  %v648 = vpop.f32.mrf.mxu0
  %v649 = vadd.f32 %v491, %v648
  %v650 = vpop.f32.mrf.mxu0
  %v651 = vadd.f32 %v491, %v650
  %652 = vdwg.mxu0
  %v653 = vpack.c.bf16 %v574, %v574
  %v654 = vpack.c.bf16 %v576, %v576
  %v655 = vpack.c.bf16 %v579, %v579
  %v656 = vpack.c.bf16 %v581, %v581
  %v657 = vpack.c.bf16 %v584, %v584
  %v658 = vpack.c.bf16 %v586, %v586
  %v659 = vpack.c.bf16 %v589, %v589
  %v660 = vpack.c.bf16 %v591, %v591
  %v661 = vpack.c.bf16 %v594, %v594
  %v662 = vpack.c.bf16 %v596, %v596
  %v663 = vpack.c.bf16 %v599, %v599
  %v664 = vpack.c.bf16 %v601, %v601
  %v665 = vpack.c.bf16 %v604, %v604
  %v666 = vpack.c.bf16 %v606, %v606
  %v667 = vpack.c.bf16 %v609, %v609
  %v668 = vpack.c.bf16 %v611, %v611
  %v669 = vpack.c.bf16 %v614, %v614
  %v670 = vpack.c.bf16 %v616, %v616
  %v671 = vpack.c.bf16 %v619, %v619
  %v672 = vpack.c.bf16 %v621, %v621
  %v673 = vpack.c.bf16 %v624, %v624
  %v674 = vpack.c.bf16 %v626, %v626
  %v675 = vpack.c.bf16 %v629, %v629
  %v676 = vpack.c.bf16 %v631, %v631
  %v677 = vpack.c.bf16 %v634, %v634
  %v678 = vpack.c.bf16 %v636, %v636
  %v679 = vpack.c.bf16 %v639, %v639
  %v680 = vpack.c.bf16 %v641, %v641
  %v681 = vpack.c.bf16 %v644, %v644
  %v682 = vpack.c.bf16 %v646, %v646
  %v683 = vpack.c.bf16 %v649, %v649
  %v684 = vpack.c.bf16 %v651, %v651
  %vm685 = vcmask 519168
  %686 = vst.msk [vmem:[%s5] sm:$0xf] %vm685, %v653
  %687 = vst.msk [vmem:[%s5 + $0x4] sm:$0xf] %vm685, %v654
  %688 = vst.msk [vmem:[%s5 + $0x8] sm:$0xf] %vm685, %v655
  %689 = vst.msk [vmem:[%s5 + $0xc] sm:$0xf] %vm685, %v656
  %690 = vst.msk [vmem:[%s5 + $0x10] sm:$0xf] %vm685, %v657
  %691 = vst.msk [vmem:[%s5 + $0x14] sm:$0xf] %vm685, %v658
  %692 = vst.msk [vmem:[%s5 + $0x18] sm:$0xf] %vm685, %v659
  %693 = vst.msk [vmem:[%s5 + $0x1c] sm:$0xf] %vm685, %v660
  %694 = vst.msk [vmem:[%s5 + $0x20] sm:$0xf] %vm685, %v661
  %695 = vst.msk [vmem:[%s5 + $0x24] sm:$0xf] %vm685, %v662
  %696 = vst.msk [vmem:[%s5 + $0x28] sm:$0xf] %vm685, %v663
  %697 = vst.msk [vmem:[%s5 + $0x2c] sm:$0xf] %vm685, %v664
  %698 = vst.msk [vmem:[%s5 + $0x30] sm:$0xf] %vm685, %v665
  %699 = vst.msk [vmem:[%s5 + $0x34] sm:$0xf] %vm685, %v666
  %700 = vst.msk [vmem:[%s5 + $0x38] sm:$0xf] %vm685, %v667
  %701 = vst.msk [vmem:[%s5 + $0x3c] sm:$0xf] %vm685, %v668
  %702 = vst.msk [vmem:[%s5 + $0x40] sm:$0xf] %vm685, %v669
  %703 = vst.msk [vmem:[%s5 + $0x44] sm:$0xf] %vm685, %v670
  %704 = vst.msk [vmem:[%s5 + $0x48] sm:$0xf] %vm685, %v671
  %705 = vst.msk [vmem:[%s5 + $0x4c] sm:$0xf] %vm685, %v672
  %706 = vst.msk [vmem:[%s5 + $0x50] sm:$0xf] %vm685, %v673
  %707 = vst.msk [vmem:[%s5 + $0x54] sm:$0xf] %vm685, %v674
  %708 = vst.msk [vmem:[%s5 + $0x58] sm:$0xf] %vm685, %v675
  %709 = vst.msk [vmem:[%s5 + $0x5c] sm:$0xf] %vm685, %v676
  %710 = vst.msk [vmem:[%s5 + $0x60] sm:$0xf] %vm685, %v677
  %711 = vst.msk [vmem:[%s5 + $0x64] sm:$0xf] %vm685, %v678
  %712 = vst.msk [vmem:[%s5 + $0x68] sm:$0xf] %vm685, %v679
  %713 = vst.msk [vmem:[%s5 + $0x6c] sm:$0xf] %vm685, %v680
  %714 = vst.msk [vmem:[%s5 + $0x70] sm:$0xf] %vm685, %v681
  %715 = vst.msk [vmem:[%s5 + $0x74] sm:$0xf] %vm685, %v682
  %716 = vst.msk [vmem:[%s5 + $0x78] sm:$0xf] %vm685, %v683
  %717 = vst.msk [vmem:[%s5 + $0x7c] sm:$0xf] %vm685, %v684
  // Predicated region
  $region22: #{tpu_custom_call.1} parent=0 // pred_check
    _
  $region23: #{tpu_custom_call.1} parent=0 // pred_check_branch
    %719 = sbr.rel (0) target = $region25
  $region24: #{tpu_custom_call.1} parent=0 // pred_region
    _
  $region25: #{tpu_custom_call.1} parent=0 // pred_fallthru
    _
  // Predicated region
  $region26: #{tpu_custom_call.1} parent=0 // pred_check
    _
  $region27: #{tpu_custom_call.1} parent=0 // pred_check_branch
    %721 = sbr.rel (0) target = $region29
  $region28: #{tpu_custom_call.1} parent=0 // pred_region
    _
  $region29: #{tpu_custom_call.1} parent=0 // pred_fallthru
    _

</llo_original>
